<compile_context>
chip_gen: v6e
topology: v6e:2x2x1
jax: 0.10.0
libtpu: 0.0.40
codegen_flags: <defaults>
</compile_context>

<pallas_src>
import jax
import jax.numpy as jnp
from jax.experimental import pallas as pl
from jax.experimental.pallas import tpu as pltpu

BN_EPS = 1e-5
LANE = 128


# ---------------------------------------------------------------------------
# Small helpers
# ---------------------------------------------------------------------------
def _round_up(n, m):
    return ((n + m - 1) // m) * m


def _pad_row(v, target):
    """(D,) vector -> (1, target) zero-padded row."""
    v = v.reshape(1, -1)
    return jnp.pad(v, ((0, 0), (0, target - v.shape[1])))


def _pad2(a, rows, cols):
    return jnp.pad(a, ((0, rows - a.shape[0]), (0, cols - a.shape[1])))


def _full_spec(shape):
    n = len(shape)
    return pl.BlockSpec(shape, lambda *_: (0,) * n)


# ---------------------------------------------------------------------------
# Fused kernel (whole MLP in one pallas_call, grid = ())
# ---------------------------------------------------------------------------
def _make_fused_mlp_kernel(num_hidden):
    """Ref layout: x, w_hidden[0..num_hidden-1], (bn_stacked if num_hidden>0),
    w_final, b_final, out."""

    def kernel(*refs):
        x_ref = refs[0]
        o_ref = refs[-1]
        if num_hidden > 0:
            w_hidden_refs = refs[1:1 + num_hidden]
            bn_ref = refs[1 + num_hidden]
            wf_ref = refs[2 + num_hidden]
            bf_ref = refs[3 + num_hidden]
        else:
            wf_ref, bf_ref = refs[1], refs[2]

        # In-kernel cast; x arrives unpadded f32 (no wrapper pad/convert op).
        h = x_ref[...].astype(jnp.bfloat16)

        if num_hidden > 0:
            bn_all = bn_ref[...]                      # (2*num_hidden, P) f32
            for layer in range(num_hidden):
                # Linear on the MXU: bf16 x bf16 -> f32 accumulate.
                # (Hidden bias omitted: it cancels under BN mean subtraction.)
                y = jnp.dot(h, w_hidden_refs[layer][...],
                            preferred_element_type=jnp.float32)   # (B, P) f32

                # BatchNorm1d, training mode, single-pass stats (f32),
                # folded into one per-feature scale/shift FMA.
                mean = jnp.mean(y, axis=0, keepdims=True)          # (1, P)
                m2 = jnp.mean(y * y, axis=0, keepdims=True)        # (1, P)
                var = jnp.maximum(m2 - mean * mean, 0.0)
                gamma = bn_all[2 * layer:2 * layer + 1, :]
                beta = bn_all[2 * layer + 1:2 * layer + 2, :]
                scale = gamma * jax.lax.rsqrt(var + BN_EPS)        # EUP rsqrt
                shift = beta - mean * scale

                h = jnp.maximum(y * scale + shift, 0.0).astype(jnp.bfloat16)

        o_ref[...] = jnp.dot(h, wf_ref[...],
                             preferred_element_type=jnp.float32) + bf_ref[...]

    return kernel


# ---------------------------------------------------------------------------
# Parameter construction (PyTorch convention) + one-time packing
# ---------------------------------------------------------------------------
def init_mlp_params(key, num_of_layers, input_dim, hidden_dim, output_dim):
    """PyTorch-style params: Linear weight (out, in), bias (out,); BN weight=1, bias=0."""
    if num_of_layers < 1:
        raise ValueError("number of layers should be positive!")
    dims = [input_dim] + [hidden_dim] * (num_of_layers - 1) + [output_dim]
    params = {"linears": [], "bns": []}
    for i in range(num_of_layers):
        key, kw, kb = jax.random.split(key, 3)
        bound = 1.0 / (dims[i] ** 0.5)
        w = jax.random.uniform(kw, (dims[i + 1], dims[i]), jnp.float32, -bound, bound)
        b = jax.random.uniform(kb, (dims[i + 1],), jnp.float32, -bound, bound)
        params["linears"].append((w, b))
    for _ in range(num_of_layers - 1):
        params["bns"].append((jnp.ones((hidden_dim,), jnp.float32),
                              jnp.zeros((hidden_dim,), jnp.float32)))
    return params


def pack_params(params, num_of_layers, input_dim, hidden_dim, output_dim):
    """One-time, out-of-hot-path transform:
      * weights transposed to (in, out), zero-padded to 128 output lanes, bf16
      * hidden-layer Linear biases DROPPED (exactly cancelled by BatchNorm)
      * gamma/beta of all BN layers stacked into ONE (2*num_hidden, P) f32 array
      * first weight keeps its true K = input_dim so x can be passed unpadded
    """
    dims = [input_dim] + [hidden_dim] * (num_of_layers - 1) + [output_dim]
    num_hidden = num_of_layers - 1
    hidden_pad = _round_up(hidden_dim, LANE) if num_hidden > 0 else None
    out_pad = _round_up(output_dim, LANE)

    w_hidden = []
    bn_rows = []
    for layer in range(num_hidden):
        w, _b_unused = params["linears"][layer]        # bias dropped (exact)
        g, bt = params["bns"][layer]
        in_rows = dims[layer] if layer == 0 else hidden_pad
        w_hidden.append(_pad2(w.T, in_rows, hidden_pad).astype(jnp.bfloat16))
        bn_rows.append(_pad_row(g, hidden_pad))        # padded lanes -> 0
        bn_rows.append(_pad_row(bt, hidden_pad))

    w, b = params["linears"][num_of_layers - 1]
    in_rows = hidden_pad if num_hidden > 0 else dims[0]
    wf = _pad2(w.T, in_rows, out_pad).astype(jnp.bfloat16)
    bf = _pad_row(b, out_pad)

    packed = {
        "num_hidden": num_hidden,
        "w_hidden": w_hidden,
        "final": (wf, bf),
        "out_pad": out_pad,
        "output_dim": output_dim,
    }
    if num_hidden > 0:
        packed["bn"] = jnp.concatenate(bn_rows, axis=0)   # (2*num_hidden, P) f32
    return packed


# ---------------------------------------------------------------------------
# Forward
# ---------------------------------------------------------------------------
def mlp_forward(packed, x):
    """x: (B, input_dim) f32 -> (B, output_dim) f32."""
    B = x.shape[0]
    num_hidden = packed["num_hidden"]
    out_pad = packed["out_pad"]

    operands = [x]                       # raw f32, cast handled in-kernel
    operands.extend(packed["w_hidden"])
    if num_hidden > 0:
        operands.append(packed["bn"])
    operands.extend(packed["final"])

    out = pl.pallas_call(
        _make_fused_mlp_kernel(num_hidden),
        out_shape=jax.ShapeDtypeStruct((B, out_pad), jnp.float32),
        in_specs=[_full_spec(op.shape) for op in operands],
        out_specs=_full_spec((B, out_pad)),
        # Tiny working set (a few hundred KB) -- far under every generation's
        # budget.  Re-derive this (and add a batch grid) before scaling B or
        # hidden_dim, especially on v7x (64 MiB physical / 32 MiB scoped).
        compiler_params=pltpu.CompilerParams(vmem_limit_bytes=16 * 1024 * 1024),
    )(*operands)

    return out[:, : packed["output_dim"]]


# ---------------------------------------------------------------------------
# Pure-JAX references (for verification)
# ---------------------------------------------------------------------------
def mlp_reference(params, x, num_of_layers, matmul_dtype=jnp.float32):
    # TODO(synk): BatchNorm1d running_mean/running_var buffers are not tracked
    # (training-mode batch statistics only), matching torch training forward.
    # Note: the reference INCLUDES the hidden-layer biases and uses two-pass
    # variance, so it also validates the kernel's bias-cancellation and
    # one-pass-variance shortcuts.
    def mm(a, w):
        return jnp.dot(a.astype(matmul_dtype), w.T.astype(matmul_dtype),
                       preferred_element_type=jnp.float32)

    h = x
    for layer in range(num_of_layers - 1):
        w, b = params["linears"][layer]
        g, bt = params["bns"][layer]
        y = mm(h, w) + b
        mean = jnp.mean(y, axis=0, keepdims=True)
        var = jnp.mean((y - mean) ** 2, axis=0, keepdims=True)
        h = jnp.maximum(g * (y - mean) / jnp.sqrt(var + BN_EPS) + bt, 0.0)
    w, b = params["linears"][num_of_layers - 1]
    return mm(h, w) + b


if __name__ == "__main__":
    num_of_layers = 3
    input_dim, hidden_dim, output_dim = 16, 32, 8
    batch = 16   # multiple of 16 -> full (16,128) bf16 sublane-packed vreg tiles

    key = jax.random.PRNGKey(0)
    key, kx = jax.random.split(key)
    x = jax.random.normal(kx, (batch, input_dim), jnp.float32)

    params = init_mlp_params(key, num_of_layers, input_dim, hidden_dim, output_dim)
    packed = pack_params(params, num_of_layers, input_dim, hidden_dim, output_dim)

    out = jax.block_until_ready(mlp_forward(packed, x))
    assert out.shape == (batch, output_dim)

    # Tight check against a reference using the same bf16-matmul / f32-BN recipe
    # (this also verifies the hidden-bias drop and one-pass variance are exact
    # to within f32 reduction-order noise).
    ref_bf16 = mlp_reference(params, x, num_of_layers, matmul_dtype=jnp.bfloat16)
    assert jnp.allclose(out, ref_bf16, atol=1e-2, rtol=1e-2), \
        "mismatch vs bf16-matmul reference"

    # Looser check against the full-f32 PyTorch-semantics reference
    # (difference is only bf16 MXU operand rounding).
    ref_f32 = mlp_reference(params, x, num_of_layers, matmul_dtype=jnp.float32)
    assert jnp.allclose(out, ref_f32, atol=6e-2, rtol=6e-2), \
        "mismatch vs f32 reference"

    print("KERNEL_OK")
</pallas_src>

<mosaic_0001>
module attributes {stable_mosaic.version = 11 : i64} {
  func.func @kernel(%arg0: memref<16x16xf32, #tpu.memory_space<vmem>>, %arg1: memref<16x128xbf16, #tpu.memory_space<vmem>>, %arg2: memref<128x128xbf16, #tpu.memory_space<vmem>>, %arg3: memref<4x128xf32, #tpu.memory_space<vmem>>, %arg4: memref<128x128xbf16, #tpu.memory_space<vmem>>, %arg5: memref<1x128xf32, #tpu.memory_space<vmem>>, %arg6: memref<16x128xf32, #tpu.memory_space<vmem>>) attributes {dimension_semantics = [], scalar_prefetch = 0 : i64, scratch_operands = 0 : i64, tpu.core_type = #tpu.core_type<tc>} {
    %c0 = arith.constant 0 : index
    %c0_0 = arith.constant 0 : index
    %0 = vector.load %arg0[%c0, %c0_0] : memref<16x16xf32, #tpu.memory_space<vmem>>, vector<16x16xf32>
    %1 = arith.truncf %0 : vector<16x16xf32> to vector<16x16xbf16>
    %c0_1 = arith.constant 0 : index
    %c0_2 = arith.constant 0 : index
    %2 = vector.load %arg3[%c0_1, %c0_2] : memref<4x128xf32, #tpu.memory_space<vmem>>, vector<4x128xf32>
    %c0_3 = arith.constant 0 : index
    %c0_4 = arith.constant 0 : index
    %3 = vector.load %arg1[%c0_3, %c0_4] : memref<16x128xbf16, #tpu.memory_space<vmem>>, vector<16x128xbf16>
    %cst = arith.constant dense<0.000000e+00> : vector<16x128xf32>
    %4 = tpu.matmul %1, %3, %cst {dimension_numbers = #tpu.dot_dimension_numbers<[1], [0], [0], [1], [0, 0, 1, 1], [], []>} : vector<16x16xbf16>, vector<16x128xbf16>, vector<16x128xf32> -> vector<16x128xf32>
    %cst_5 = arith.constant dense<0.000000e+00> : vector<128xf32>
    %5 = vector.multi_reduction <add>, %4, %cst_5 [0] : vector<16x128xf32> to vector<128xf32>
    %6 = vector.shape_cast %5 : vector<128xf32> to vector<1x128xf32>
    %cst_6 = arith.constant 1.600000e+01 : f32
    %7 = vector.broadcast %cst_6 : f32 to vector<1x128xf32>
    %8 = arith.divf %6, %7 : vector<1x128xf32>
    %9 = arith.mulf %4, %4 : vector<16x128xf32>
    %cst_7 = arith.constant dense<0.000000e+00> : vector<128xf32>
    %10 = vector.multi_reduction <add>, %9, %cst_7 [0] : vector<16x128xf32> to vector<128xf32>
    %11 = vector.shape_cast %10 : vector<128xf32> to vector<1x128xf32>
    %cst_8 = arith.constant 1.600000e+01 : f32
    %12 = vector.broadcast %cst_8 : f32 to vector<1x128xf32>
    %13 = arith.divf %11, %12 : vector<1x128xf32>
    %14 = arith.mulf %8, %8 : vector<1x128xf32>
    %15 = arith.subf %13, %14 : vector<1x128xf32>
    %cst_9 = arith.constant 0.000000e+00 : f32
    %16 = vector.broadcast %cst_9 : f32 to vector<1x128xf32>
    %17 = arith.maximumf %15, %16 : vector<1x128xf32>
    %18 = vector.extract_strided_slice %2 {offsets = [0, 0], sizes = [1, 128], strides = [1, 1]} : vector<4x128xf32> to vector<1x128xf32>
    %19 = vector.extract_strided_slice %2 {offsets = [1, 0], sizes = [1, 128], strides = [1, 1]} : vector<4x128xf32> to vector<1x128xf32>
    %cst_10 = arith.constant 9.99999974E-6 : f32
    %20 = vector.broadcast %cst_10 : f32 to vector<1x128xf32>
    %21 = arith.addf %17, %20 : vector<1x128xf32>
    %22 = math.rsqrt %21 : vector<1x128xf32>
    %23 = arith.mulf %18, %22 : vector<1x128xf32>
    %24 = arith.mulf %8, %23 : vector<1x128xf32>
    %25 = arith.subf %19, %24 : vector<1x128xf32>
    %26 = vector.broadcast %23 : vector<1x128xf32> to vector<16x128xf32>
    %27 = arith.mulf %4, %26 : vector<16x128xf32>
    %28 = vector.broadcast %25 : vector<1x128xf32> to vector<16x128xf32>
    %29 = arith.addf %27, %28 : vector<16x128xf32>
    %cst_11 = arith.constant 0.000000e+00 : f32
    %30 = vector.broadcast %cst_11 : f32 to vector<16x128xf32>
    %31 = arith.maximumf %29, %30 : vector<16x128xf32>
    %32 = arith.truncf %31 : vector<16x128xf32> to vector<16x128xbf16>
    %c0_12 = arith.constant 0 : index
    %c0_13 = arith.constant 0 : index
    %33 = vector.load %arg2[%c0_12, %c0_13] : memref<128x128xbf16, #tpu.memory_space<vmem>>, vector<128x128xbf16>
    %cst_14 = arith.constant dense<0.000000e+00> : vector<16x128xf32>
    %34 = tpu.matmul %32, %33, %cst_14 {dimension_numbers = #tpu.dot_dimension_numbers<[1], [0], [0], [1], [0, 0, 1, 1], [], []>} : vector<16x128xbf16>, vector<128x128xbf16>, vector<16x128xf32> -> vector<16x128xf32>
    %cst_15 = arith.constant dense<0.000000e+00> : vector<128xf32>
    %35 = vector.multi_reduction <add>, %34, %cst_15 [0] : vector<16x128xf32> to vector<128xf32>
    %36 = vector.shape_cast %35 : vector<128xf32> to vector<1x128xf32>
    %cst_16 = arith.constant 1.600000e+01 : f32
    %37 = vector.broadcast %cst_16 : f32 to vector<1x128xf32>
    %38 = arith.divf %36, %37 : vector<1x128xf32>
    %39 = arith.mulf %34, %34 : vector<16x128xf32>
    %cst_17 = arith.constant dense<0.000000e+00> : vector<128xf32>
    %40 = vector.multi_reduction <add>, %39, %cst_17 [0] : vector<16x128xf32> to vector<128xf32>
    %41 = vector.shape_cast %40 : vector<128xf32> to vector<1x128xf32>
    %cst_18 = arith.constant 1.600000e+01 : f32
    %42 = vector.broadcast %cst_18 : f32 to vector<1x128xf32>
    %43 = arith.divf %41, %42 : vector<1x128xf32>
    %44 = arith.mulf %38, %38 : vector<1x128xf32>
    %45 = arith.subf %43, %44 : vector<1x128xf32>
    %cst_19 = arith.constant 0.000000e+00 : f32
    %46 = vector.broadcast %cst_19 : f32 to vector<1x128xf32>
    %47 = arith.maximumf %45, %46 : vector<1x128xf32>
    %48 = vector.extract_strided_slice %2 {offsets = [2, 0], sizes = [1, 128], strides = [1, 1]} : vector<4x128xf32> to vector<1x128xf32>
    %49 = vector.extract_strided_slice %2 {offsets = [3, 0], sizes = [1, 128], strides = [1, 1]} : vector<4x128xf32> to vector<1x128xf32>
    %cst_20 = arith.constant 9.99999974E-6 : f32
    %50 = vector.broadcast %cst_20 : f32 to vector<1x128xf32>
    %51 = arith.addf %47, %50 : vector<1x128xf32>
    %52 = math.rsqrt %51 : vector<1x128xf32>
    %53 = arith.mulf %48, %52 : vector<1x128xf32>
    %54 = arith.mulf %38, %53 : vector<1x128xf32>
    %55 = arith.subf %49, %54 : vector<1x128xf32>
    %56 = vector.broadcast %53 : vector<1x128xf32> to vector<16x128xf32>
    %57 = arith.mulf %34, %56 : vector<16x128xf32>
    %58 = vector.broadcast %55 : vector<1x128xf32> to vector<16x128xf32>
    %59 = arith.addf %57, %58 : vector<16x128xf32>
    %cst_21 = arith.constant 0.000000e+00 : f32
    %60 = vector.broadcast %cst_21 : f32 to vector<16x128xf32>
    %61 = arith.maximumf %59, %60 : vector<16x128xf32>
    %62 = arith.truncf %61 : vector<16x128xf32> to vector<16x128xbf16>
    %c0_22 = arith.constant 0 : index
    %c0_23 = arith.constant 0 : index
    %63 = vector.load %arg4[%c0_22, %c0_23] : memref<128x128xbf16, #tpu.memory_space<vmem>>, vector<128x128xbf16>
    %cst_24 = arith.constant dense<0.000000e+00> : vector<16x128xf32>
    %64 = tpu.matmul %62, %63, %cst_24 {dimension_numbers = #tpu.dot_dimension_numbers<[1], [0], [0], [1], [0, 0, 1, 1], [], []>} : vector<16x128xbf16>, vector<128x128xbf16>, vector<16x128xf32> -> vector<16x128xf32>
    %c0_25 = arith.constant 0 : index
    %c0_26 = arith.constant 0 : index
    %65 = vector.load %arg5[%c0_25, %c0_26] : memref<1x128xf32, #tpu.memory_space<vmem>>, vector<1x128xf32>
    %66 = vector.broadcast %65 : vector<1x128xf32> to vector<16x128xf32>
    %67 = arith.addf %64, %66 : vector<16x128xf32>
    %c0_27 = arith.constant 0 : index
    %c0_28 = arith.constant 0 : index
    %68 = vector.load %arg6[%c0_27, %c0_28] : memref<16x128xf32, #tpu.memory_space<vmem>>, vector<16x128xf32>
    tpu.vector_store %arg6[%c0_27, %c0_28], %67 {strides = array<i32>} : memref<16x128xf32, #tpu.memory_space<vmem>>, vector<16x128xf32>,
    return
  }
}

</mosaic_0001>

<llo_original>
// kernel: tpu_custom_call.1
$region0: #{tpu_custom_call.1}
  #allocation0 [shape = 'u32[]', space=smem, size = 0x4, offset = 0x4, fixed_abs, tag = 'smem constant byte address 0x4 - core index']
  #allocation1 [shape = 'u32[144,128]{1,0:T(1,128)}', space=vmem, size = 0x12000, scoped, tag = 'internal scratch']
  %s0 = inlined_call_operand.hbm [shape: f32[16,16], index: 0, kind: input, shape index: {}]
  %s1 = inlined_call_operand.hbm [shape: bf16[16,128], index: 1, kind: input, shape index: {}]
  %s2 = inlined_call_operand.hbm [shape: bf16[128,128], index: 2, kind: input, shape index: {}]
  %s3 = inlined_call_operand.vmem [shape: f32[4,128], index: 3, kind: input, shape index: {}]
  %s4 = inlined_call_operand.hbm [shape: bf16[128,128], index: 4, kind: input, shape index: {}]
  %s5 = inlined_call_operand.vmem [shape: f32[1,128], index: 5, kind: input, shape index: {}]
  %s6 = inlined_call_operand.hbm [shape: f32[16,128], index: 6, kind: output, shape index: {}]
  %s7 = sld [smem:[#allocation0]]
  $region50: #{tpu_custom_call.1} parent=0
    _
  %s9 = ssub.s32 1, %s7
  %s10 = scalar_select 0, %s9, %s7
  $region1: #{tpu_custom_call.1} parent=0
    #allocation2 [shape = 'u8[8192]{0}', space=vmem, size = 0x2000, scoped, tag = 'input window, operand 0, single buffered']
    #allocation3 [shape = 's32[1]{0}', space=sflag, size = 0x4, scoped, tag = 'scoped memory for tpu_custom_call.1']
    #allocation4 [shape = 's32[1]{0}', space=sflag, size = 0x4, scoped, tag = 'scoped memory for tpu_custom_call.1']
    #allocation5 [shape = 'u8[4096]{0}', space=vmem, size = 0x1000, scoped, tag = 'input window, operand 1, single buffered']
    #allocation6 [shape = 's32[1]{0}', space=sflag, size = 0x4, scoped, tag = 'scoped memory for tpu_custom_call.1']
    #allocation7 [shape = 'u8[32768]{0}', space=vmem, size = 0x8000, scoped, tag = 'input window, operand 2, single buffered']
    #allocation8 [shape = 'u8[32768]{0}', space=vmem, size = 0x8000, scoped, tag = 'input window, operand 4, single buffered']
    #allocation9 [shape = 's32[1]{0}', space=sflag, size = 0x4, scoped, tag = 'scoped memory for tpu_custom_call.1']
    #allocation10 [shape = 'u8[8192]{0}', space=vmem, size = 0x2000, scoped, tag = 'output window, operand 0, single buffered']
    %11 = vsyncpa [#allocation3], 0
    %12 = vsyncpa [#allocation6], 0
    %13 = vsyncpa [#allocation9], 0
    %14 = vsyncpa [#allocation4], 0
    // Predicated region
    $region2: #{tpu_custom_call.1} parent=1 // pred_check
      _
    $region3: #{tpu_custom_call.1} parent=1 // pred_check_branch
      %16 = sbr.rel (0) target = $region5
    $region4: #{tpu_custom_call.1} parent=1 // pred_region
      %s18 = ssub.s32 256, 256
      %19 = vsyncadd [#allocation3], %s18
      %s20 = sshll.u32 [#allocation2], 4
      %s21 = int_to_ptr.vmem [resolvable:$true] %s20
      %26 = dma.hbm_to_vmem [thread:$0]  %s0, 256, %s21, [#allocation3], 128, 128, 8
    $region5: #{tpu_custom_call.1} parent=1 // pred_fallthru
      _
    // Predicated region
    $region6: #{tpu_custom_call.1} parent=1 // pred_check
      _
    $region7: #{tpu_custom_call.1} parent=1 // pred_check_branch
      %28 = sbr.rel (0) target = $region9
    $region8: #{tpu_custom_call.1} parent=1 // pred_region
      %s30 = ssub.s32 128, 128
      %31 = vsyncadd [#allocation6], %s30
      %s32 = sshll.u32 [#allocation5], 4
      %s33 = int_to_ptr.vmem [resolvable:$true] %s32
      %38 = dma.hbm_to_vmem [thread:$0]  %s1, 128, %s33, [#allocation6], 64, 64, 4
    $region9: #{tpu_custom_call.1} parent=1 // pred_fallthru
      _
    // Predicated region
    $region10: #{tpu_custom_call.1} parent=1 // pred_check
      _
    $region11: #{tpu_custom_call.1} parent=1 // pred_check_branch
      %40 = sbr.rel (0) target = $region13
    $region12: #{tpu_custom_call.1} parent=1 // pred_region
      %s42 = ssub.s32 1024, 1024
      %43 = vsyncadd [#allocation6], %s42
      %s44 = sshll.u32 [#allocation7], 4
      %s45 = int_to_ptr.vmem [resolvable:$true] %s44
      %50 = dma.hbm_to_vmem [thread:$0]  %s2, 1024, %s45, [#allocation6], 64, 64, 4
    $region13: #{tpu_custom_call.1} parent=1 // pred_fallthru
      _
    // Predicated region
    $region14: #{tpu_custom_call.1} parent=1 // pred_check
      _
    $region15: #{tpu_custom_call.1} parent=1 // pred_check_branch
      %52 = sbr.rel (0) target = $region17
    $region16: #{tpu_custom_call.1} parent=1 // pred_region
      _
    $region17: #{tpu_custom_call.1} parent=1 // pred_fallthru
      _
    // Predicated region
    $region18: #{tpu_custom_call.1} parent=1 // pred_check
      _
    $region19: #{tpu_custom_call.1} parent=1 // pred_check_branch
      %54 = sbr.rel (0) target = $region21
    $region20: #{tpu_custom_call.1} parent=1 // pred_region
      %s56 = ssub.s32 1024, 1024
      %57 = vsyncadd [#allocation9], %s56
      %s58 = sshll.u32 [#allocation8], 4
      %s59 = int_to_ptr.vmem [resolvable:$true] %s58
      %64 = dma.hbm_to_vmem [thread:$0]  %s4, 1024, %s59, [#allocation9], 64, 64, 4
    $region21: #{tpu_custom_call.1} parent=1 // pred_fallthru
      _
    // Predicated region
    $region22: #{tpu_custom_call.1} parent=1 // pred_check
      _
    $region23: #{tpu_custom_call.1} parent=1 // pred_check_branch
      %66 = sbr.rel (0) target = $region25
    $region24: #{tpu_custom_call.1} parent=1 // pred_region
      _
    $region25: #{tpu_custom_call.1} parent=1 // pred_fallthru
      _
    // Predicated region
    $region26: #{tpu_custom_call.1} parent=1 // pred_check
      _
    $region27: #{tpu_custom_call.1} parent=1 // pred_check_branch
      %68 = sbr.rel (0) target = $region29
    $region28: #{tpu_custom_call.1} parent=1 // pred_region
      %69 = dma.done [#allocation3], 256
    $region29: #{tpu_custom_call.1} parent=1 // pred_fallthru
      _
    // Predicated region
    $region30: #{tpu_custom_call.1} parent=1 // pred_check
      _
    $region31: #{tpu_custom_call.1} parent=1 // pred_check_branch
      %71 = sbr.rel (0) target = $region33
    $region32: #{tpu_custom_call.1} parent=1 // pred_region
      %72 = dma.done [#allocation6], 128
    $region33: #{tpu_custom_call.1} parent=1 // pred_fallthru
      _
    // Predicated region
    $region34: #{tpu_custom_call.1} parent=1 // pred_check
      _
    $region35: #{tpu_custom_call.1} parent=1 // pred_check_branch
      %74 = sbr.rel (0) target = $region37
    $region36: #{tpu_custom_call.1} parent=1 // pred_region
      %75 = dma.done [#allocation6], 1024
    $region37: #{tpu_custom_call.1} parent=1 // pred_fallthru
      _
    // Predicated region
    $region38: #{tpu_custom_call.1} parent=1 // pred_check
      _
    $region39: #{tpu_custom_call.1} parent=1 // pred_check_branch
      %77 = sbr.rel (0) target = $region41
    $region40: #{tpu_custom_call.1} parent=1 // pred_region
      %78 = dma.done [#allocation9], 1024
    $region41: #{tpu_custom_call.1} parent=1 // pred_fallthru
      _
    %v80 = vld [vmem:[#allocation2] sm:$0xff]
    %v81 = vld [vmem:[#allocation2 + $0x8] sm:$0xff]
    %v82 = vpack.c.bf16 %v81, %v80
    %v83 = vld [vmem:[%s3] sm:$0xf]
    %v84 = vld [vmem:[#allocation5] sm:$0xf]
    %v85 = vld [vmem:[#allocation5 + $0x4] sm:$0xf]
    %v88 = vunpack.c.l.b16 %v84
    %v89 = vunpack.c.l.b16 %v85
    %v90 = vpack.c.b16 %v89, %v88
    %vm92 = vcmask 130048
    %v94 = vsel %vm92, %v82, 0
    %96 = vmatprep.subr.bf16.mxu0 0
    %97 = vmatpush1.bf16.msra.mxu0 0
    %98 = vmatprep.subr.bf16.mxu0 0
    %99 = vmatpush1.bf16.msra.mxu0 0
    %100 = vmatprep.subr.bf16.mxu0 0
    %101 = vmatpush1.bf16.msra.mxu0 0
    %102 = vmatprep.subr.bf16.mxu0 0
    %103 = vmatpush1.bf16.msra.mxu0 0
    %104 = vmatprep.subr.bf16.mxu0 0
    %105 = vmatpush1.bf16.msra.mxu0 0
    %106 = vmatprep.subr.bf16.mxu0 0
    %107 = vmatpush1.bf16.msra.mxu0 0
    %108 = vmatprep.subr.bf16.mxu0 0
    %109 = vmatpush1.bf16.msra.mxu0 0
    %110 = vmatprep.subr.bf16.mxu0 0
    %111 = vmatpush1.bf16.msra.mxu0 %v90
    %112 = vmatprep.subr.bf16.mxu0 0
    %113 = vmatpush2.bf16.msra.mxu0 0
    %114 = vmatprep.subr.bf16.mxu0 0
    %115 = vmatpush2.bf16.msra.mxu0 0
    %116 = vmatprep.subr.bf16.mxu0 0
    %117 = vmatpush2.bf16.msra.mxu0 0
    %118 = vmatprep.subr.bf16.mxu0 0
    %119 = vmatpush2.bf16.msra.mxu0 0
    %120 = vmatprep.subr.bf16.mxu0 0
    %121 = vmatpush2.bf16.msra.mxu0 0
    %122 = vmatprep.subr.bf16.mxu0 0
    %123 = vmatpush2.bf16.msra.mxu0 0
    %124 = vmatprep.subr.bf16.mxu0 0
    %125 = vmatpush2.bf16.msra.mxu0 0
    %126 = vmatprep.subr.bf16.mxu0 0
    %127 = vmatpush2.bf16.msra.mxu0 0
    %128 = vmatprep.mubr.bf16.mxu0 0
    %129 = vmatmul.mubr.bf16.gmra.mxu0 %v94
    %v130 = vpop.f32.mrf.mxu0
    %v131 = vadd.f32 0.0, %v130
    %v132 = vpop.f32.mrf.mxu0
    %v133 = vpop.f32.mrf.mxu0
    %v134 = vadd.f32 0.0, %v133
    %v135 = vpop.f32.mrf.mxu0
    %136 = vdwg.mxu0
    %v137 = vadd.f32 %v131, %v134
    %v138 = vrot.slane %v137, 4
    %v139 = vadd.f32 %v137, %v138
    %v140 = vrot.slane %v139, 2
    %v141 = vadd.f32 %v139, %v140
    %v142 = vrot.slane %v141, 1
    %v143 = vadd.f32 %v141, %v142
    %v144 = vrcp.pop 16.0
    %v145 = vmul.f32 %v143, %v144
    %v146 = vmul.f32 %v131, %v131
    %v147 = vmul.f32 %v134, %v134
    %v148 = vadd.f32 %v146, %v147
    %v149 = vrot.slane %v148, 4
    %v150 = vadd.f32 %v148, %v149
    %v151 = vrot.slane %v150, 2
    %v152 = vadd.f32 %v150, %v151
    %v153 = vrot.slane %v152, 1
    %v154 = vadd.f32 %v152, %v153
    %v155 = vmul.f32 %v154, %v144
    %v156 = vmul.f32 %v145, %v145
    %v157 = vsub.f32 %v155, %v156
    %v158 = vmax.f32 %v157, 0.0
    %v159 = vadd.f32 %v158, 1e-05
    %v160 = vrsqrt.pop %v159
    %v161 = vmul.f32 %v83, %v160
    %v162 = vmul.f32 %v145, %v161
    %v164 = vrot.slane %v162, 7
    %v166 = vsub.f32 %v83, %v164
    %v167 = vlaneseq
    %v168 = vshrl.u32 %v167, 7
    %v169 = vsub.s32 0, %v168
    %v170 = vrot.slane %v161, %v169
    %v171 = vmul.f32 %v131, %v170
    %v172 = vmul.f32 %v134, %v170
    %v173 = vlaneseq
    %v174 = vshrl.u32 %v173, 7
    %v175 = vsub.s32 1, %v174
    %v176 = vrot.slane %v166, %v175
    %v177 = vadd.f32 %v171, %v176
    %v178 = vadd.f32 %v172, %v176
    %v179 = vmax.f32 %v177, 0.0
    %v180 = vmax.f32 %v178, 0.0
    %v181 = vpack.c.bf16 %v180, %v179
    %v182 = vld [vmem:[#allocation7] sm:$0xf]
    %v183 = vld [vmem:[#allocation7 + $0x4] sm:$0xf]
    %v184 = vld [vmem:[#allocation7 + $0x8] sm:$0xf]
    %v185 = vld [vmem:[#allocation7 + $0xc] sm:$0xf]
    %v186 = vld [vmem:[#allocation7 + $0x10] sm:$0xf]
    %v187 = vld [vmem:[#allocation7 + $0x14] sm:$0xf]
    %v188 = vld [vmem:[#allocation7 + $0x18] sm:$0xf]
    %v189 = vld [vmem:[#allocation7 + $0x1c] sm:$0xf]
    %v190 = vld [vmem:[#allocation7 + $0x20] sm:$0xf]
    %v191 = vld [vmem:[#allocation7 + $0x24] sm:$0xf]
    %v192 = vld [vmem:[#allocation7 + $0x28] sm:$0xf]
    %v193 = vld [vmem:[#allocation7 + $0x2c] sm:$0xf]
    %v194 = vld [vmem:[#allocation7 + $0x30] sm:$0xf]
    %v195 = vld [vmem:[#allocation7 + $0x34] sm:$0xf]
    %v196 = vld [vmem:[#allocation7 + $0x38] sm:$0xf]
    %v197 = vld [vmem:[#allocation7 + $0x3c] sm:$0xf]
    %v214 = vunpack.c.l.b16 %v182
    %v215 = vunpack.c.l.b16 %v183
    %v216 = vunpack.c.l.b16 %v184
    %v217 = vunpack.c.l.b16 %v185
    %v218 = vunpack.c.l.b16 %v186
    %v219 = vunpack.c.l.b16 %v187
    %v220 = vunpack.c.l.b16 %v188
    %v221 = vunpack.c.l.b16 %v189
    %v222 = vunpack.c.l.b16 %v190
    %v223 = vunpack.c.l.b16 %v191
    %v224 = vunpack.c.l.b16 %v192
    %v225 = vunpack.c.l.b16 %v193
    %v226 = vunpack.c.l.b16 %v194
    %v227 = vunpack.c.l.b16 %v195
    %v228 = vunpack.c.l.b16 %v196
    %v229 = vunpack.c.l.b16 %v197
    %v230 = vpack.c.b16 %v215, %v214
    %v231 = vpack.c.b16 %v217, %v216
    %v232 = vpack.c.b16 %v219, %v218
    %v233 = vpack.c.b16 %v221, %v220
    %v234 = vpack.c.b16 %v223, %v222
    %v235 = vpack.c.b16 %v225, %v224
    %v236 = vpack.c.b16 %v227, %v226
    %v237 = vpack.c.b16 %v229, %v228
    %246 = vmatprep.subr.bf16.mxu0 0
    %247 = vmatpush1.bf16.msra.mxu0 %v237
    %248 = vmatprep.subr.bf16.mxu0 0
    %249 = vmatpush1.bf16.msra.mxu0 %v236
    %250 = vmatprep.subr.bf16.mxu0 0
    %251 = vmatpush1.bf16.msra.mxu0 %v235
    %252 = vmatprep.subr.bf16.mxu0 0
    %253 = vmatpush1.bf16.msra.mxu0 %v234
    %254 = vmatprep.subr.bf16.mxu0 0
    %255 = vmatpush1.bf16.msra.mxu0 %v233
    %256 = vmatprep.subr.bf16.mxu0 0
    %257 = vmatpush1.bf16.msra.mxu0 %v232
    %258 = vmatprep.subr.bf16.mxu0 0
    %259 = vmatpush1.bf16.msra.mxu0 %v231
    %260 = vmatprep.subr.bf16.mxu0 0
    %261 = vmatpush1.bf16.msra.mxu0 %v230
    %262 = vmatprep.subr.bf16.mxu0 0
    %263 = vmatpush2.bf16.msra.mxu0 0
    %264 = vmatprep.subr.bf16.mxu0 0
    %265 = vmatpush2.bf16.msra.mxu0 0
    %266 = vmatprep.subr.bf16.mxu0 0
    %267 = vmatpush2.bf16.msra.mxu0 0
    %268 = vmatprep.subr.bf16.mxu0 0
    %269 = vmatpush2.bf16.msra.mxu0 0
    %270 = vmatprep.subr.bf16.mxu0 0
    %271 = vmatpush2.bf16.msra.mxu0 0
    %272 = vmatprep.subr.bf16.mxu0 0
    %273 = vmatpush2.bf16.msra.mxu0 0
    %274 = vmatprep.subr.bf16.mxu0 0
    %275 = vmatpush2.bf16.msra.mxu0 0
    %276 = vmatprep.subr.bf16.mxu0 0
    %277 = vmatpush2.bf16.msra.mxu0 0
    %278 = vmatprep.mubr.bf16.mxu0 0
    %279 = vmatmul.mubr.bf16.gmra.mxu0 %v181
    %v280 = vpop.f32.mrf.mxu0
    %v281 = vadd.f32 0.0, %v280
    %v282 = vpop.f32.mrf.mxu0
    %v283 = vpop.f32.mrf.mxu0
    %v284 = vadd.f32 0.0, %v283
    %v285 = vpop.f32.mrf.mxu0
    %286 = vdwg.mxu0
    %v287 = vadd.f32 %v281, %v284
    %v288 = vrot.slane %v287, 4
    %v289 = vadd.f32 %v287, %v288
    %v290 = vrot.slane %v289, 2
    %v291 = vadd.f32 %v289, %v290
    %v292 = vrot.slane %v291, 1
    %v293 = vadd.f32 %v291, %v292
    %v294 = vmul.f32 %v293, %v144
    %v295 = vmul.f32 %v281, %v281
    %v296 = vmul.f32 %v284, %v284
    %v297 = vadd.f32 %v295, %v296
    %v298 = vrot.slane %v297, 4
    %v299 = vadd.f32 %v297, %v298
    %v300 = vrot.slane %v299, 2
    %v301 = vadd.f32 %v299, %v300
    %v302 = vrot.slane %v301, 1
    %v303 = vadd.f32 %v301, %v302
    %v304 = vmul.f32 %v303, %v144
    %v305 = vmul.f32 %v294, %v294
    %v306 = vsub.f32 %v304, %v305
    %v307 = vmax.f32 %v306, 0.0
    %v308 = vadd.f32 %v307, 1e-05
    %v309 = vrsqrt.pop %v308
    %v310 = vmul.f32 %v83, %v309
    %v311 = vmul.f32 %v294, %v310
    %v313 = vrot.slane %v311, 7
    %v315 = vsub.f32 %v83, %v313
    %v316 = vlaneseq
    %v317 = vshrl.u32 %v316, 7
    %v318 = vsub.s32 2, %v317
    %v319 = vrot.slane %v310, %v318
    %v320 = vmul.f32 %v281, %v319
    %v321 = vmul.f32 %v284, %v319
    %v322 = vlaneseq
    %v323 = vshrl.u32 %v322, 7
    %v324 = vsub.s32 3, %v323
    %v325 = vrot.slane %v315, %v324
    %v326 = vadd.f32 %v320, %v325
    %v327 = vadd.f32 %v321, %v325
    %v328 = vmax.f32 %v326, 0.0
    %v329 = vmax.f32 %v327, 0.0
    %v330 = vpack.c.bf16 %v329, %v328
    %v331 = vld [vmem:[#allocation8] sm:$0xf]
    %v332 = vld [vmem:[#allocation8 + $0x4] sm:$0xf]
    %v333 = vld [vmem:[#allocation8 + $0x8] sm:$0xf]
    %v334 = vld [vmem:[#allocation8 + $0xc] sm:$0xf]
    %v335 = vld [vmem:[#allocation8 + $0x10] sm:$0xf]
    %v336 = vld [vmem:[#allocation8 + $0x14] sm:$0xf]
    %v337 = vld [vmem:[#allocation8 + $0x18] sm:$0xf]
    %v338 = vld [vmem:[#allocation8 + $0x1c] sm:$0xf]
    %v339 = vld [vmem:[#allocation8 + $0x20] sm:$0xf]
    %v340 = vld [vmem:[#allocation8 + $0x24] sm:$0xf]
    %v341 = vld [vmem:[#allocation8 + $0x28] sm:$0xf]
    %v342 = vld [vmem:[#allocation8 + $0x2c] sm:$0xf]
    %v343 = vld [vmem:[#allocation8 + $0x30] sm:$0xf]
    %v344 = vld [vmem:[#allocation8 + $0x34] sm:$0xf]
    %v345 = vld [vmem:[#allocation8 + $0x38] sm:$0xf]
    %v346 = vld [vmem:[#allocation8 + $0x3c] sm:$0xf]
    %v347 = vld [vmem:[%s5] sm:$0x1]
    %v349 = vlaneseq
    %v350 = vshrl.u32 %v349, 7
    %v351 = vsub.s32 0, %v350
    %v352 = vrot.slane %v347, %v351
    %v370 = vunpack.c.l.b16 %v331
    %v371 = vunpack.c.l.b16 %v332
    %v372 = vunpack.c.l.b16 %v333
    %v373 = vunpack.c.l.b16 %v334
    %v374 = vunpack.c.l.b16 %v335
    %v375 = vunpack.c.l.b16 %v336
    %v376 = vunpack.c.l.b16 %v337
    %v377 = vunpack.c.l.b16 %v338
    %v378 = vunpack.c.l.b16 %v339
    %v379 = vunpack.c.l.b16 %v340
    %v380 = vunpack.c.l.b16 %v341
    %v381 = vunpack.c.l.b16 %v342
    %v382 = vunpack.c.l.b16 %v343
    %v383 = vunpack.c.l.b16 %v344
    %v384 = vunpack.c.l.b16 %v345
    %v385 = vunpack.c.l.b16 %v346
    %v386 = vpack.c.b16 %v371, %v370
    %v387 = vpack.c.b16 %v373, %v372
    %v388 = vpack.c.b16 %v375, %v374
    %v389 = vpack.c.b16 %v377, %v376
    %v390 = vpack.c.b16 %v379, %v378
    %v391 = vpack.c.b16 %v381, %v380
    %v392 = vpack.c.b16 %v383, %v382
    %v393 = vpack.c.b16 %v385, %v384
    %402 = vmatprep.subr.bf16.mxu0 0
    %403 = vmatpush1.bf16.msra.mxu0 %v393
    %404 = vmatprep.subr.bf16.mxu0 0
    %405 = vmatpush1.bf16.msra.mxu0 %v392
    %406 = vmatprep.subr.bf16.mxu0 0
    %407 = vmatpush1.bf16.msra.mxu0 %v391
    %408 = vmatprep.subr.bf16.mxu0 0
    %409 = vmatpush1.bf16.msra.mxu0 %v390
    %410 = vmatprep.subr.bf16.mxu0 0
    %411 = vmatpush1.bf16.msra.mxu0 %v389
    %412 = vmatprep.subr.bf16.mxu0 0
    %413 = vmatpush1.bf16.msra.mxu0 %v388
    %414 = vmatprep.subr.bf16.mxu0 0
    %415 = vmatpush1.bf16.msra.mxu0 %v387
    %416 = vmatprep.subr.bf16.mxu0 0
    %417 = vmatpush1.bf16.msra.mxu0 %v386
    %418 = vmatprep.subr.bf16.mxu0 0
    %419 = vmatpush2.bf16.msra.mxu0 0
    %420 = vmatprep.subr.bf16.mxu0 0
    %421 = vmatpush2.bf16.msra.mxu0 0
    %422 = vmatprep.subr.bf16.mxu0 0
    %423 = vmatpush2.bf16.msra.mxu0 0
    %424 = vmatprep.subr.bf16.mxu0 0
    %425 = vmatpush2.bf16.msra.mxu0 0
    %426 = vmatprep.subr.bf16.mxu0 0
    %427 = vmatpush2.bf16.msra.mxu0 0
    %428 = vmatprep.subr.bf16.mxu0 0
    %429 = vmatpush2.bf16.msra.mxu0 0
    %430 = vmatprep.subr.bf16.mxu0 0
    %431 = vmatpush2.bf16.msra.mxu0 0
    %432 = vmatprep.subr.bf16.mxu0 0
    %433 = vmatpush2.bf16.msra.mxu0 0
    %434 = vmatprep.mubr.bf16.mxu0 0
    %435 = vmatmul.mubr.bf16.gmra.mxu0 %v330
    %v436 = vpop.f32.mrf.mxu0
    %v437 = vadd.f32 %v352, %v436
    %v438 = vpop.f32.mrf.mxu0
    %v439 = vpop.f32.mrf.mxu0
    %v440 = vadd.f32 %v352, %v439
    %v441 = vpop.f32.mrf.mxu0
    %442 = vdwg.mxu0
    %443 = vst [vmem:[#allocation10] sm:$0xff] %v437
    %444 = vst [vmem:[#allocation10 + $0x8] sm:$0xff] %v440
    // Predicated region
    $region42: #{tpu_custom_call.1} parent=1 // pred_check
      _
    $region43: #{tpu_custom_call.1} parent=1 // pred_check_branch
      %446 = sbr.rel (0) target = $region45
    $region44: #{tpu_custom_call.1} parent=1 // pred_region
      %s448 = ssub.s32 256, 256
      %449 = vsyncadd [#allocation4], %s448
      %s450 = sshll.u32 [#allocation10], 4
      %s451 = int_to_ptr.vmem [resolvable:$true] %s450
      %456 = dma.vmem_to_hbm [thread:$0]  %s451, 256, %s6, [#allocation4], 128, 128, 8
    $region45: #{tpu_custom_call.1} parent=1 // pred_fallthru
      _
    // Predicated region
    $region46: #{tpu_custom_call.1} parent=1 // pred_check
      _
    $region47: #{tpu_custom_call.1} parent=1 // pred_check_branch
      %458 = sbr.rel (0) target = $region49
    $region48: #{tpu_custom_call.1} parent=1 // pred_region
      %459 = dma.done [#allocation4], 256
    $region49: #{tpu_custom_call.1} parent=1 // pred_fallthru
      _
    %460 = vsyncpa [#allocation3], 1
    %461 = vsyncpa [#allocation6], 1
    %462 = vsyncpa [#allocation9], 1
    %463 = vsyncpa [#allocation4], 1

</llo_original>
